<compile_context>
chip_gen: v7x
topology: tpu7x:2x2x1
jax: 0.10.0
libtpu: 0.0.40
codegen_flags: <defaults>
</compile_context>

<pallas_src>
import jax
import jax.numpy as jnp
from jax.experimental import pallas as pl
from jax.experimental.pallas import tpu as pltpu


def mlp_kernel(x_ref, w1_ref, b1_ref, w2_ref, b2_ref, w3_ref, b3_ref, o_ref):
    # --- layer 1: Linear (BN folded) + ReLU  (Dropout = identity, eval) ---
    x = x_ref[...].astype(jnp.bfloat16)                       # in-kernel f32->bf16 cast
    h = jnp.dot(x, w1_ref[...], preferred_element_type=jnp.float32)
    h = jnp.maximum(h + b1_ref[...], 0.0).astype(jnp.bfloat16)

    # --- layer 2: Linear (BN folded) + ReLU  (Dropout = identity, eval) ---
    h = jnp.dot(h, w2_ref[...], preferred_element_type=jnp.float32)
    h = jnp.maximum(h + b2_ref[...], 0.0).astype(jnp.bfloat16)

    # --- layer 3: Linear -> narrow (n_classes-wide) f32 logits -------------
    o_ref[...] = (jnp.dot(h, w3_ref[...], preferred_element_type=jnp.float32)
                  + b3_ref[...])


def _pick_tm(batch):
    """One batch tile per TensorCore: grid=(1,) on v5e/v6e, grid=(2,) on v7x."""
    try:
        kind = jax.devices()[0].device_kind.lower()
    except Exception:
        kind = ""
    n_cores = 2 if "7" in kind else 1          # v7x has 2 TCs/chip; v5e/v6e have 1
    rows = pl.cdiv(batch, n_cores)
    tm = ((rows + 7) // 8) * 8                 # multiple of 8 (sublane)
    # Cap so double-buffered streamed tiles stay far below the scoped-VMEM
    # default (~160 B/row here); raise vmem_limit_bytes if ever pushed past.
    return max(8, min(tm, 8192))


def simple_mlp_forward(x, params, *, tm=None):
    """Fused MLP forward. x: [B, F] f32. Returns [B, n_classes] f32 logits."""
    w1, b1, w2, b2, w3, b3 = params
    B, F = x.shape
    H = w1.shape[1]
    C = w3.shape[1]

    if tm is None:
        tm = _pick_tm(B)
    n_blocks = pl.cdiv(B, tm)

    const = lambda i: (0, 0)   # weights/biases: same block every step (VMEM-resident)

    flops = 2 * B * (F * H + H * H + H * C)
    bytes_accessed = (B * F * 4 + B * C * 4
                      + (w1.size + w2.size + w3.size) * 2
                      + (b1.size + b2.size + b3.size) * 4)

    out = pl.pallas_call(
        mlp_kernel,
        out_shape=jax.ShapeDtypeStruct((B, C), jnp.float32),
        grid_spec=pltpu.PrefetchScalarGridSpec(
            num_scalar_prefetch=0,
            grid=(n_blocks,),
            in_specs=[
                pl.BlockSpec((tm, F), lambda i: (i, 0)),   # x: streamed per batch tile
                pl.BlockSpec((F, H), const),               # w1 (BN folded, bf16)
                pl.BlockSpec((1, H), const),               # b1 (BN folded, f32)
                pl.BlockSpec((H, H), const),               # w2 (BN folded, bf16)
                pl.BlockSpec((1, H), const),               # b2 (BN folded, f32)
                pl.BlockSpec((H, C), const),               # w3 (bf16, n_classes wide)
                pl.BlockSpec((1, C), const),               # b3 (f32)
            ],
            out_specs=pl.BlockSpec((tm, C), lambda i: (i, 0)),
        ),
        compiler_params=pltpu.CompilerParams(
            dimension_semantics=("parallel",)),
        cost_estimate=pl.CostEstimate(
            flops=flops, transcendentals=0, bytes_accessed=bytes_accessed),
    )(x, w1, b1, w2, b2, w3, b3)

    return out


def init_params(key, input_dim, hidden_dim, n_classes, eps=1e-5):
    """PyTorch-style Linear init; BatchNorm1d (eval, default running stats)
    folded into the preceding Linear; weights cast to bf16."""
    ks = jax.random.split(key, 6)

    def linear(kw, kb, fan_in, fan_out):
        bound = 1.0 / jnp.sqrt(fan_in)
        w = jax.random.uniform(kw, (fan_in, fan_out), jnp.float32, -bound, bound)
        b = jax.random.uniform(kb, (1, fan_out), jnp.float32, -bound, bound)
        return w, b

    w1, b1 = linear(ks[0], ks[1], input_dim, hidden_dim)
    w2, b2 = linear(ks[2], ks[3], hidden_dim, hidden_dim)
    w3, b3 = linear(ks[4], ks[5], hidden_dim, n_classes)

    # BatchNorm1d eval-mode defaults: gamma=1, beta=0, mean=0, var=1.
    #   y = (x - mean)/sqrt(var+eps)*gamma + beta = x*scale + shift
    # Fold into the preceding Linear: W' = W*scale, b' = b*scale + shift.
    def fold_bn(w, b, hidden):
        gamma = jnp.ones((hidden,), jnp.float32)
        beta = jnp.zeros((hidden,), jnp.float32)
        mean = jnp.zeros((hidden,), jnp.float32)
        var = jnp.ones((hidden,), jnp.float32)
        scale = gamma / jnp.sqrt(var + eps)
        shift = beta - mean * scale
        return w * scale[None, :], b * scale[None, :] + shift[None, :]

    w1, b1 = fold_bn(w1, b1, hidden_dim)
    w2, b2 = fold_bn(w2, b2, hidden_dim)

    # bf16 MXU operands; biases stay f32 (accumulation/elementwise in f32).
    return (w1.astype(jnp.bfloat16), b1,
            w2.astype(jnp.bfloat16), b2,
            w3.astype(jnp.bfloat16), b3)


def reference_forward(x, params):
    """Pure-JAX reference with the same numeric recipe (bf16 operands, f32 acc)."""
    w1, b1, w2, b2, w3, b3 = params
    h = x.astype(jnp.bfloat16)
    h = jnp.maximum(jnp.dot(h, w1, preferred_element_type=jnp.float32) + b1, 0.0)
    h = h.astype(jnp.bfloat16)
    h = jnp.maximum(jnp.dot(h, w2, preferred_element_type=jnp.float32) + b2, 0.0)
    h = h.astype(jnp.bfloat16)
    return jnp.dot(h, w3, preferred_element_type=jnp.float32) + b3


if __name__ == "__main__":
    B, INPUT_DIM, HIDDEN_DIM, N_CLASSES = 200, 16, 128, 4  # B not a power-of-2 tile

    key = jax.random.PRNGKey(0)
    k_x, k_p = jax.random.split(key)
    x = jax.random.normal(k_x, (B, INPUT_DIM), dtype=jnp.float32)
    params = init_params(k_p, INPUT_DIM, HIDDEN_DIM, N_CLASSES)

    out = simple_mlp_forward(x, params)
    out = jax.block_until_ready(out)

    ref = reference_forward(x, params)
    assert out.shape == (B, N_CLASSES)
    assert jnp.allclose(out, ref, atol=2e-3, rtol=2e-3)

    print("KERNEL_OK")
</pallas_src>

<mosaic_0001>
module attributes {stable_mosaic.version = 11 : i64} {
  func.func @mlp_kernel(%arg0: i32, %arg1: memref<200x16xf32, #tpu.memory_space<vmem>>, %arg2: memref<16x128xbf16, #tpu.memory_space<vmem>>, %arg3: memref<1x128xf32, #tpu.memory_space<vmem>>, %arg4: memref<128x128xbf16, #tpu.memory_space<vmem>>, %arg5: memref<1x128xf32, #tpu.memory_space<vmem>>, %arg6: memref<128x4xbf16, #tpu.memory_space<vmem>>, %arg7: memref<1x4xf32, #tpu.memory_space<vmem>>, %arg8: memref<200x4xf32, #tpu.memory_space<vmem>>) attributes {dimension_semantics = [#tpu.dimension_semantics<parallel>], iteration_bounds = array<i64: 1>, scalar_prefetch = 0 : i64, scratch_operands = 0 : i64, tpu.core_type = #tpu.core_type<tc>, window_params = [{transform_indices = @transform_0, window_bounds = array<i64: 200, 16>}, {pipeline_mode = #tpu.pipeline_mode<synchronous>, transform_indices = @transform_1, window_bounds = array<i64: 16, 128>}, {pipeline_mode = #tpu.pipeline_mode<synchronous>, transform_indices = @transform_2, window_bounds = array<i64: 1, 128>}, {pipeline_mode = #tpu.pipeline_mode<synchronous>, transform_indices = @transform_3, window_bounds = array<i64: 128, 128>}, {pipeline_mode = #tpu.pipeline_mode<synchronous>, transform_indices = @transform_4, window_bounds = array<i64: 1, 128>}, {pipeline_mode = #tpu.pipeline_mode<synchronous>, transform_indices = @transform_5, window_bounds = array<i64: 128, 4>}, {pipeline_mode = #tpu.pipeline_mode<synchronous>, transform_indices = @transform_6, window_bounds = array<i64: 1, 4>}, {transform_indices = @transform_7, window_bounds = array<i64: 200, 4>}]} {
    %c0 = arith.constant 0 : index
    %c0_0 = arith.constant 0 : index
    %0 = vector.load %arg1[%c0, %c0_0] : memref<200x16xf32, #tpu.memory_space<vmem>>, vector<200x16xf32>
    %1 = arith.truncf %0 : vector<200x16xf32> to vector<200x16xbf16>
    %c0_1 = arith.constant 0 : index
    %c0_2 = arith.constant 0 : index
    %2 = vector.load %arg2[%c0_1, %c0_2] : memref<16x128xbf16, #tpu.memory_space<vmem>>, vector<16x128xbf16>
    %cst = arith.constant dense<0.000000e+00> : vector<200x128xf32>
    %3 = tpu.matmul %1, %2, %cst {dimension_numbers = #tpu.dot_dimension_numbers<[1], [0], [0], [1], [0, 0, 1, 1], [], []>} : vector<200x16xbf16>, vector<16x128xbf16>, vector<200x128xf32> -> vector<200x128xf32>
    %c0_3 = arith.constant 0 : index
    %c0_4 = arith.constant 0 : index
    %4 = vector.load %arg3[%c0_3, %c0_4] : memref<1x128xf32, #tpu.memory_space<vmem>>, vector<1x128xf32>
    %5 = vector.broadcast %4 : vector<1x128xf32> to vector<200x128xf32>
    %6 = arith.addf %3, %5 : vector<200x128xf32>
    %cst_5 = arith.constant 0.000000e+00 : f32
    %7 = vector.broadcast %cst_5 : f32 to vector<200x128xf32>
    %8 = arith.maximumf %6, %7 : vector<200x128xf32>
    %9 = arith.truncf %8 : vector<200x128xf32> to vector<200x128xbf16>
    %c0_6 = arith.constant 0 : index
    %c0_7 = arith.constant 0 : index
    %10 = vector.load %arg4[%c0_6, %c0_7] : memref<128x128xbf16, #tpu.memory_space<vmem>>, vector<128x128xbf16>
    %cst_8 = arith.constant dense<0.000000e+00> : vector<200x128xf32>
    %11 = tpu.matmul %9, %10, %cst_8 {dimension_numbers = #tpu.dot_dimension_numbers<[1], [0], [0], [1], [0, 0, 1, 1], [], []>} : vector<200x128xbf16>, vector<128x128xbf16>, vector<200x128xf32> -> vector<200x128xf32>
    %c0_9 = arith.constant 0 : index
    %c0_10 = arith.constant 0 : index
    %12 = vector.load %arg5[%c0_9, %c0_10] : memref<1x128xf32, #tpu.memory_space<vmem>>, vector<1x128xf32>
    %13 = vector.broadcast %12 : vector<1x128xf32> to vector<200x128xf32>
    %14 = arith.addf %11, %13 : vector<200x128xf32>
    %cst_11 = arith.constant 0.000000e+00 : f32
    %15 = vector.broadcast %cst_11 : f32 to vector<200x128xf32>
    %16 = arith.maximumf %14, %15 : vector<200x128xf32>
    %17 = arith.truncf %16 : vector<200x128xf32> to vector<200x128xbf16>
    %c0_12 = arith.constant 0 : index
    %c0_13 = arith.constant 0 : index
    %18 = vector.load %arg6[%c0_12, %c0_13] : memref<128x4xbf16, #tpu.memory_space<vmem>>, vector<128x4xbf16>
    %cst_14 = arith.constant dense<0.000000e+00> : vector<200x4xf32>
    %19 = tpu.matmul %17, %18, %cst_14 {dimension_numbers = #tpu.dot_dimension_numbers<[1], [0], [0], [1], [0, 0, 1, 1], [], []>} : vector<200x128xbf16>, vector<128x4xbf16>, vector<200x4xf32> -> vector<200x4xf32>
    %c0_15 = arith.constant 0 : index
    %c0_16 = arith.constant 0 : index
    %20 = vector.load %arg7[%c0_15, %c0_16] : memref<1x4xf32, #tpu.memory_space<vmem>>, vector<1x4xf32>
    %21 = vector.broadcast %20 : vector<1x4xf32> to vector<200x4xf32>
    %22 = arith.addf %19, %21 : vector<200x4xf32>
    %c0_17 = arith.constant 0 : index
    %c0_18 = arith.constant 0 : index
    %23 = vector.load %arg8[%c0_17, %c0_18] : memref<200x4xf32, #tpu.memory_space<vmem>>, vector<200x4xf32>
    tpu.vector_store %arg8[%c0_17, %c0_18], %22 {strides = array<i32>} : memref<200x4xf32, #tpu.memory_space<vmem>>, vector<200x4xf32>,
    return
  }
  func.func @transform_0(%arg0: i32) -> (i32, i32) {
    %c0_i32 = arith.constant 0 : i32
    %c0_i32_0 = arith.constant 0 : i32
    return %arg0, %c0_i32 : i32, i32
  }
  func.func @transform_1(%arg0: i32) -> (i32, i32) {
    %c0_i32 = arith.constant 0 : i32
    %c0_i32_0 = arith.constant 0 : i32
    %c0_i32_1 = arith.constant 0 : i32
    return %c0_i32, %c0_i32_0 : i32, i32
  }
  func.func @transform_2(%arg0: i32) -> (i32, i32) {
    %c0_i32 = arith.constant 0 : i32
    %c0_i32_0 = arith.constant 0 : i32
    %c0_i32_1 = arith.constant 0 : i32
    return %c0_i32, %c0_i32_0 : i32, i32
  }
  func.func @transform_3(%arg0: i32) -> (i32, i32) {
    %c0_i32 = arith.constant 0 : i32
    %c0_i32_0 = arith.constant 0 : i32
    %c0_i32_1 = arith.constant 0 : i32
    return %c0_i32, %c0_i32_0 : i32, i32
  }
  func.func @transform_4(%arg0: i32) -> (i32, i32) {
    %c0_i32 = arith.constant 0 : i32
    %c0_i32_0 = arith.constant 0 : i32
    %c0_i32_1 = arith.constant 0 : i32
    return %c0_i32, %c0_i32_0 : i32, i32
  }
  func.func @transform_5(%arg0: i32) -> (i32, i32) {
    %c0_i32 = arith.constant 0 : i32
    %c0_i32_0 = arith.constant 0 : i32
    %c0_i32_1 = arith.constant 0 : i32
    return %c0_i32, %c0_i32_0 : i32, i32
  }
  func.func @transform_6(%arg0: i32) -> (i32, i32) {
    %c0_i32 = arith.constant 0 : i32
    %c0_i32_0 = arith.constant 0 : i32
    %c0_i32_1 = arith.constant 0 : i32
    return %c0_i32, %c0_i32_0 : i32, i32
  }
  func.func @transform_7(%arg0: i32) -> (i32, i32) {
    %c0_i32 = arith.constant 0 : i32
    %c0_i32_0 = arith.constant 0 : i32
    return %arg0, %c0_i32 : i32, i32
  }
}

</mosaic_0001>

<llo_original>
// kernel: tpu_custom_call.1
$region0: #{tpu_custom_call.1}
  #allocation0 [shape = 'u32[]', space=smem, size = 0x4, offset = 0x4, fixed_abs, tag = 'smem constant byte address 0x4 - core index']
  #allocation1 [shape = 'u32[144,128]{1,0:T(1,128)}', space=vmem, size = 0x12000, scoped, tag = 'internal scratch']
  %s0 = inlined_call_operand.vmem [shape: f32[200,16], index: 0, kind: input, shape index: {}]
  %s1 = inlined_call_operand.vmem [shape: bf16[16,128], index: 1, kind: input, shape index: {}]
  %s2 = inlined_call_operand.vmem [shape: f32[1,128], index: 2, kind: input, shape index: {}]
  %s3 = inlined_call_operand.vmem [shape: bf16[128,128], index: 3, kind: input, shape index: {}]
  %s4 = inlined_call_operand.vmem [shape: f32[1,128], index: 4, kind: input, shape index: {}]
  %s5 = inlined_call_operand.vmem [shape: bf16[128,4], index: 5, kind: input, shape index: {}]
  %s6 = inlined_call_operand.vmem [shape: f32[1,4], index: 6, kind: input, shape index: {}]
  %s7 = inlined_call_operand.vmem [shape: f32[200,4], index: 7, kind: output, shape index: {}]
  %s8 = sld [smem:[#allocation0]]
  $region38: #{tpu_custom_call.1} parent=0
    _
  %s10 = ssub.s32 1, %s8
  %s11 = scalar_select 0, %s10, %s8
  // Predicated region
  $region2: #{tpu_custom_call.1} parent=0 // pred_check
    _
  $region3: #{tpu_custom_call.1} parent=0 // pred_check_branch
    %13 = sbr.rel (0) target = $region5
  $region4: #{tpu_custom_call.1} parent=0 // pred_region
    _
  $region5: #{tpu_custom_call.1} parent=0 // pred_fallthru
    _
  // Predicated region
  $region6: #{tpu_custom_call.1} parent=0 // pred_check
    _
  $region7: #{tpu_custom_call.1} parent=0 // pred_check_branch
    %15 = sbr.rel (0) target = $region9
  $region8: #{tpu_custom_call.1} parent=0 // pred_region
    _
  $region9: #{tpu_custom_call.1} parent=0 // pred_fallthru
    _
  // Predicated region
  $region10: #{tpu_custom_call.1} parent=0 // pred_check
    _
  $region11: #{tpu_custom_call.1} parent=0 // pred_check_branch
    %17 = sbr.rel (0) target = $region13
  $region12: #{tpu_custom_call.1} parent=0 // pred_region
    _
  $region13: #{tpu_custom_call.1} parent=0 // pred_fallthru
    _
  // Predicated region
  $region14: #{tpu_custom_call.1} parent=0 // pred_check
    _
  $region15: #{tpu_custom_call.1} parent=0 // pred_check_branch
    %19 = sbr.rel (0) target = $region17
  $region16: #{tpu_custom_call.1} parent=0 // pred_region
    _
  $region17: #{tpu_custom_call.1} parent=0 // pred_fallthru
    _
  // Predicated region
  $region18: #{tpu_custom_call.1} parent=0 // pred_check
    _
  $region19: #{tpu_custom_call.1} parent=0 // pred_check_branch
    %21 = sbr.rel (0) target = $region21
  $region20: #{tpu_custom_call.1} parent=0 // pred_region
    _
  $region21: #{tpu_custom_call.1} parent=0 // pred_fallthru
    _
  // Predicated region
  $region22: #{tpu_custom_call.1} parent=0 // pred_check
    _
  $region23: #{tpu_custom_call.1} parent=0 // pred_check_branch
    %23 = sbr.rel (0) target = $region25
  $region24: #{tpu_custom_call.1} parent=0 // pred_region
    _
  $region25: #{tpu_custom_call.1} parent=0 // pred_fallthru
    _
  // Predicated region
  $region26: #{tpu_custom_call.1} parent=0 // pred_check
    _
  $region27: #{tpu_custom_call.1} parent=0 // pred_check_branch
    %25 = sbr.rel (0) target = $region29
  $region28: #{tpu_custom_call.1} parent=0 // pred_region
    _
  $region29: #{tpu_custom_call.1} parent=0 // pred_fallthru
    _
  %v27 = vld [vmem:[%s0] sm:$0xff]
  %v28 = vld [vmem:[%s0 + $0x8] sm:$0xff]
  %v29 = vld [vmem:[%s0 + $0x10] sm:$0xff]
  %v30 = vld [vmem:[%s0 + $0x18] sm:$0xff]
  %v31 = vld [vmem:[%s0 + $0x20] sm:$0xff]
  %v32 = vld [vmem:[%s0 + $0x28] sm:$0xff]
  %v33 = vld [vmem:[%s0 + $0x30] sm:$0xff]
  %v34 = vld [vmem:[%s0 + $0x38] sm:$0xff]
  %v35 = vld [vmem:[%s0 + $0x40] sm:$0xff]
  %v36 = vld [vmem:[%s0 + $0x48] sm:$0xff]
  %v37 = vld [vmem:[%s0 + $0x50] sm:$0xff]
  %v38 = vld [vmem:[%s0 + $0x58] sm:$0xff]
  %v39 = vld [vmem:[%s0 + $0x60] sm:$0xff]
  %v40 = vld [vmem:[%s0 + $0x68] sm:$0xff]
  %v41 = vld [vmem:[%s0 + $0x70] sm:$0xff]
  %v42 = vld [vmem:[%s0 + $0x78] sm:$0xff]
  %v43 = vld [vmem:[%s0 + $0x80] sm:$0xff]
  %v44 = vld [vmem:[%s0 + $0x88] sm:$0xff]
  %v45 = vld [vmem:[%s0 + $0x90] sm:$0xff]
  %v46 = vld [vmem:[%s0 + $0x98] sm:$0xff]
  %v47 = vld [vmem:[%s0 + $0xa0] sm:$0xff]
  %v48 = vld [vmem:[%s0 + $0xa8] sm:$0xff]
  %v49 = vld [vmem:[%s0 + $0xb0] sm:$0xff]
  %v50 = vld [vmem:[%s0 + $0xb8] sm:$0xff]
  %v51 = vld [vmem:[%s0 + $0xc0] sm:$0xff]
  %v52 = vpack.c.bf16 %v28, %v27
  %v53 = vpack.c.bf16 %v30, %v29
  %v54 = vpack.c.bf16 %v32, %v31
  %v55 = vpack.c.bf16 %v34, %v33
  %v56 = vpack.c.bf16 %v36, %v35
  %v57 = vpack.c.bf16 %v38, %v37
  %v58 = vpack.c.bf16 %v40, %v39
  %v59 = vpack.c.bf16 %v42, %v41
  %v60 = vpack.c.bf16 %v44, %v43
  %v61 = vpack.c.bf16 %v46, %v45
  %v62 = vpack.c.bf16 %v48, %v47
  %v63 = vpack.c.bf16 %v50, %v49
  %v64 = vpack.c.bf16 %v51, %v51
  %v65 = vld [vmem:[%s1] sm:$0xf]
  %v66 = vld [vmem:[%s1 + $0x4] sm:$0xf]
  %v67 = vld [vmem:[%s2] sm:$0x1]
  %v69 = vlaneseq
  %v70 = vshrl.u32 %v69, 7
  %v71 = vsub.s32 0, %v70
  %v72 = vrot.slane %v67, %v71
  %v76 = vunpack.c.l.b16 %v65
  %v77 = vunpack.c.l.b16 %v66
  %v78 = vpack.c.b16 %v77, %v76
  %vm80 = vcmask 130048
  %v82 = vsel %vm80, %v52, 0
  %v85 = vsel %vm80, %v53, 0
  %v88 = vsel %vm80, %v54, 0
  %v91 = vsel %vm80, %v55, 0
  %v94 = vsel %vm80, %v56, 0
  %v97 = vsel %vm80, %v57, 0
  %v100 = vsel %vm80, %v58, 0
  %v103 = vsel %vm80, %v59, 0
  %v106 = vsel %vm80, %v60, 0
  %v109 = vsel %vm80, %v61, 0
  %v112 = vsel %vm80, %v62, 0
  %v115 = vsel %vm80, %v63, 0
  %v118 = vsel %vm80, %v64, 0
  %120 = vmatprep.subr.bf16.mxu0 0
  %121 = vmatpush1.bf16.msra.mxu0 %v78
  %122 = vmatprep.subr.bf16.mxu0 0
  %123 = vmatpush1.bf16.msra.mxu0 0
  %124 = vmatprep.subr.bf16.mxu0 0
  %125 = vmatpush1.bf16.msra.mxu0 0
  %126 = vmatprep.subr.bf16.mxu0 0
  %127 = vmatpush1.bf16.msra.mxu0 0
  %128 = vmatprep.subr.bf16.mxu0 0
  %129 = vmatpush1.bf16.msra.mxu0 0
  %130 = vmatprep.subr.bf16.mxu0 0
  %131 = vmatpush1.bf16.msra.mxu0 0
  %132 = vmatprep.subr.bf16.mxu0 0
  %133 = vmatpush1.bf16.msra.mxu0 0
  %134 = vmatprep.subr.bf16.mxu0 0
  %135 = vmatpush1.bf16.msra.mxu0 0
  %136 = vmatprep.subr.bf16.mxu0 0
  %137 = vmatpush1.bf16.msra.mxu0 0
  %138 = vmatprep.subr.bf16.mxu0 0
  %139 = vmatpush1.bf16.msra.mxu0 0
  %140 = vmatprep.subr.bf16.mxu0 0
  %141 = vmatpush1.bf16.msra.mxu0 0
  %142 = vmatprep.subr.bf16.mxu0 0
  %143 = vmatpush1.bf16.msra.mxu0 0
  %144 = vmatprep.subr.bf16.mxu0 0
  %145 = vmatpush1.bf16.msra.mxu0 0
  %146 = vmatprep.subr.bf16.mxu0 0
  %147 = vmatpush1.bf16.msra.mxu0 0
  %148 = vmatprep.subr.bf16.mxu0 0
  %149 = vmatpush1.bf16.msra.mxu0 0
  %150 = vmatprep.subr.bf16.mxu0 0
  %151 = vmatpush1.bf16.msra.mxu0 0
  %152 = vmatprep.mubr.bf16.mxu0 0
  %153 = vmatmul.mubr.bf16.gmra.mrb[0].mxu0 %v82
  %v154 = vpop.f32.mrb[0].mxu0
  %v155 = vadd.f32 %v72, %v154
  %v156 = vpop.f32.mrb[0].mxu0
  %v157 = vpop.f32.mrb[0].mxu0
  %v158 = vadd.f32 %v72, %v157
  %v159 = vpop.f32.mrb[0].mxu0
  %160 = vmatprep.mubr.bf16.mxu0 0
  %161 = vmatmul.mubr.bf16.gmra.mrb[0].mxu0 %v85
  %v162 = vpop.f32.mrb[0].mxu0
  %v163 = vadd.f32 %v72, %v162
  %v164 = vpop.f32.mrb[0].mxu0
  %v165 = vpop.f32.mrb[0].mxu0
  %v166 = vadd.f32 %v72, %v165
  %v167 = vpop.f32.mrb[0].mxu0
  %168 = vmatprep.mubr.bf16.mxu0 0
  %169 = vmatmul.mubr.bf16.gmra.mrb[0].mxu0 %v88
  %v170 = vpop.f32.mrb[0].mxu0
  %v171 = vadd.f32 %v72, %v170
  %v172 = vpop.f32.mrb[0].mxu0
  %v173 = vpop.f32.mrb[0].mxu0
  %v174 = vadd.f32 %v72, %v173
  %v175 = vpop.f32.mrb[0].mxu0
  %176 = vmatprep.mubr.bf16.mxu0 0
  %177 = vmatmul.mubr.bf16.gmra.mrb[0].mxu0 %v91
  %v178 = vpop.f32.mrb[0].mxu0
  %v179 = vadd.f32 %v72, %v178
  %v180 = vpop.f32.mrb[0].mxu0
  %v181 = vpop.f32.mrb[0].mxu0
  %v182 = vadd.f32 %v72, %v181
  %v183 = vpop.f32.mrb[0].mxu0
  %184 = vmatprep.mubr.bf16.mxu0 0
  %185 = vmatmul.mubr.bf16.gmra.mrb[0].mxu0 %v94
  %v186 = vpop.f32.mrb[0].mxu0
  %v187 = vadd.f32 %v72, %v186
  %v188 = vpop.f32.mrb[0].mxu0
  %v189 = vpop.f32.mrb[0].mxu0
  %v190 = vadd.f32 %v72, %v189
  %v191 = vpop.f32.mrb[0].mxu0
  %192 = vmatprep.mubr.bf16.mxu0 0
  %193 = vmatmul.mubr.bf16.gmra.mrb[0].mxu0 %v97
  %v194 = vpop.f32.mrb[0].mxu0
  %v195 = vadd.f32 %v72, %v194
  %v196 = vpop.f32.mrb[0].mxu0
  %v197 = vpop.f32.mrb[0].mxu0
  %v198 = vadd.f32 %v72, %v197
  %v199 = vpop.f32.mrb[0].mxu0
  %200 = vmatprep.mubr.bf16.mxu0 0
  %201 = vmatmul.mubr.bf16.gmra.mrb[0].mxu0 %v100
  %v202 = vpop.f32.mrb[0].mxu0
  %v203 = vadd.f32 %v72, %v202
  %v204 = vpop.f32.mrb[0].mxu0
  %v205 = vpop.f32.mrb[0].mxu0
  %v206 = vadd.f32 %v72, %v205
  %v207 = vpop.f32.mrb[0].mxu0
  %208 = vmatprep.mubr.bf16.mxu0 0
  %209 = vmatmul.mubr.bf16.gmra.mrb[0].mxu0 %v103
  %v210 = vpop.f32.mrb[0].mxu0
  %v211 = vadd.f32 %v72, %v210
  %v212 = vpop.f32.mrb[0].mxu0
  %v213 = vpop.f32.mrb[0].mxu0
  %v214 = vadd.f32 %v72, %v213
  %v215 = vpop.f32.mrb[0].mxu0
  %216 = vmatprep.mubr.bf16.mxu0 0
  %217 = vmatmul.mubr.bf16.gmra.mrb[0].mxu0 %v106
  %v218 = vpop.f32.mrb[0].mxu0
  %v219 = vadd.f32 %v72, %v218
  %v220 = vpop.f32.mrb[0].mxu0
  %v221 = vpop.f32.mrb[0].mxu0
  %v222 = vadd.f32 %v72, %v221
  %v223 = vpop.f32.mrb[0].mxu0
  %224 = vmatprep.mubr.bf16.mxu0 0
  %225 = vmatmul.mubr.bf16.gmra.mrb[0].mxu0 %v109
  %v226 = vpop.f32.mrb[0].mxu0
  %v227 = vadd.f32 %v72, %v226
  %v228 = vpop.f32.mrb[0].mxu0
  %v229 = vpop.f32.mrb[0].mxu0
  %v230 = vadd.f32 %v72, %v229
  %v231 = vpop.f32.mrb[0].mxu0
  %232 = vmatprep.mubr.bf16.mxu0 0
  %233 = vmatmul.mubr.bf16.gmra.mrb[0].mxu0 %v112
  %v234 = vpop.f32.mrb[0].mxu0
  %v235 = vadd.f32 %v72, %v234
  %v236 = vpop.f32.mrb[0].mxu0
  %v237 = vpop.f32.mrb[0].mxu0
  %v238 = vadd.f32 %v72, %v237
  %v239 = vpop.f32.mrb[0].mxu0
  %240 = vmatprep.mubr.bf16.mxu0 0
  %241 = vmatmul.mubr.bf16.gmra.mrb[0].mxu0 %v115
  %v242 = vpop.f32.mrb[0].mxu0
  %v243 = vadd.f32 %v72, %v242
  %v244 = vpop.f32.mrb[0].mxu0
  %v245 = vpop.f32.mrb[0].mxu0
  %v246 = vadd.f32 %v72, %v245
  %v247 = vpop.f32.mrb[0].mxu0
  %248 = vmatprep.mubr.bf16.mxu0 0
  %249 = vmatmul.mubr.bf16.gmra.mrb[0].mxu0 %v118
  %v250 = vpop.f32.mrb[0].mxu0
  %v251 = vadd.f32 %v72, %v250
  %v252 = vpop.f32.mrb[0].mxu0
  %v253 = vpop.f32.mrb[0].mxu0
  %v254 = vpop.f32.mrb[0].mxu0
  %255 = vdwg.mxu0
  %v256 = vmax.f32 %v155, 0.0
  %v257 = vmax.f32 %v158, 0.0
  %v258 = vmax.f32 %v163, 0.0
  %v259 = vmax.f32 %v166, 0.0
  %v260 = vmax.f32 %v171, 0.0
  %v261 = vmax.f32 %v174, 0.0
  %v262 = vmax.f32 %v179, 0.0
  %v263 = vmax.f32 %v182, 0.0
  %v264 = vmax.f32 %v187, 0.0
  %v265 = vmax.f32 %v190, 0.0
  %v266 = vmax.f32 %v195, 0.0
  %v267 = vmax.f32 %v198, 0.0
  %v268 = vmax.f32 %v203, 0.0
  %v269 = vmax.f32 %v206, 0.0
  %v270 = vmax.f32 %v211, 0.0
  %v271 = vmax.f32 %v214, 0.0
  %v272 = vmax.f32 %v219, 0.0
  %v273 = vmax.f32 %v222, 0.0
  %v274 = vmax.f32 %v227, 0.0
  %v275 = vmax.f32 %v230, 0.0
  %v276 = vmax.f32 %v235, 0.0
  %v277 = vmax.f32 %v238, 0.0
  %v278 = vmax.f32 %v243, 0.0
  %v279 = vmax.f32 %v246, 0.0
  %v280 = vmax.f32 %v251, 0.0
  %v281 = vpack.c.bf16 %v257, %v256
  %v282 = vpack.c.bf16 %v259, %v258
  %v283 = vpack.c.bf16 %v261, %v260
  %v284 = vpack.c.bf16 %v263, %v262
  %v285 = vpack.c.bf16 %v265, %v264
  %v286 = vpack.c.bf16 %v267, %v266
  %v287 = vpack.c.bf16 %v269, %v268
  %v288 = vpack.c.bf16 %v271, %v270
  %v289 = vpack.c.bf16 %v273, %v272
  %v290 = vpack.c.bf16 %v275, %v274
  %v291 = vpack.c.bf16 %v277, %v276
  %v292 = vpack.c.bf16 %v279, %v278
  %v293 = vpack.c.bf16 %v280, %v280
  %v294 = vld [vmem:[%s3] sm:$0xf]
  %v295 = vld [vmem:[%s3 + $0x4] sm:$0xf]
  %v296 = vld [vmem:[%s3 + $0x8] sm:$0xf]
  %v297 = vld [vmem:[%s3 + $0xc] sm:$0xf]
  %v298 = vld [vmem:[%s3 + $0x10] sm:$0xf]
  %v299 = vld [vmem:[%s3 + $0x14] sm:$0xf]
  %v300 = vld [vmem:[%s3 + $0x18] sm:$0xf]
  %v301 = vld [vmem:[%s3 + $0x1c] sm:$0xf]
  %v302 = vld [vmem:[%s3 + $0x20] sm:$0xf]
  %v303 = vld [vmem:[%s3 + $0x24] sm:$0xf]
  %v304 = vld [vmem:[%s3 + $0x28] sm:$0xf]
  %v305 = vld [vmem:[%s3 + $0x2c] sm:$0xf]
  %v306 = vld [vmem:[%s3 + $0x30] sm:$0xf]
  %v307 = vld [vmem:[%s3 + $0x34] sm:$0xf]
  %v308 = vld [vmem:[%s3 + $0x38] sm:$0xf]
  %v309 = vld [vmem:[%s3 + $0x3c] sm:$0xf]
  %v310 = vld [vmem:[%s4] sm:$0x1]
  %v312 = vlaneseq
  %v313 = vshrl.u32 %v312, 7
  %v314 = vsub.s32 0, %v313
  %v315 = vrot.slane %v310, %v314
  %v333 = vunpack.c.l.b16 %v294
  %v334 = vunpack.c.l.b16 %v295
  %v335 = vunpack.c.l.b16 %v296
  %v336 = vunpack.c.l.b16 %v297
  %v337 = vunpack.c.l.b16 %v298
  %v338 = vunpack.c.l.b16 %v299
  %v339 = vunpack.c.l.b16 %v300
  %v340 = vunpack.c.l.b16 %v301
  %v341 = vunpack.c.l.b16 %v302
  %v342 = vunpack.c.l.b16 %v303
  %v343 = vunpack.c.l.b16 %v304
  %v344 = vunpack.c.l.b16 %v305
  %v345 = vunpack.c.l.b16 %v306
  %v346 = vunpack.c.l.b16 %v307
  %v347 = vunpack.c.l.b16 %v308
  %v348 = vunpack.c.l.b16 %v309
  %v349 = vpack.c.b16 %v334, %v333
  %v350 = vpack.c.b16 %v336, %v335
  %v351 = vpack.c.b16 %v338, %v337
  %v352 = vpack.c.b16 %v340, %v339
  %v353 = vpack.c.b16 %v342, %v341
  %v354 = vpack.c.b16 %v344, %v343
  %v355 = vpack.c.b16 %v346, %v345
  %v356 = vpack.c.b16 %v348, %v347
  %365 = vmatprep.subr.bf16.mxu0 0
  %366 = vmatpush1.bf16.msra.mxu0 %v349
  %367 = vmatprep.subr.bf16.mxu0 0
  %368 = vmatpush1.bf16.msra.mxu0 %v350
  %369 = vmatprep.subr.bf16.mxu0 0
  %370 = vmatpush1.bf16.msra.mxu0 %v351
  %371 = vmatprep.subr.bf16.mxu0 0
  %372 = vmatpush1.bf16.msra.mxu0 %v352
  %373 = vmatprep.subr.bf16.mxu0 0
  %374 = vmatpush1.bf16.msra.mxu0 %v353
  %375 = vmatprep.subr.bf16.mxu0 0
  %376 = vmatpush1.bf16.msra.mxu0 %v354
  %377 = vmatprep.subr.bf16.mxu0 0
  %378 = vmatpush1.bf16.msra.mxu0 %v355
  %379 = vmatprep.subr.bf16.mxu0 0
  %380 = vmatpush1.bf16.msra.mxu0 %v356
  %381 = vmatprep.subr.bf16.mxu0 0
  %382 = vmatpush1.bf16.msra.mxu0 0
  %383 = vmatprep.subr.bf16.mxu0 0
  %384 = vmatpush1.bf16.msra.mxu0 0
  %385 = vmatprep.subr.bf16.mxu0 0
  %386 = vmatpush1.bf16.msra.mxu0 0
  %387 = vmatprep.subr.bf16.mxu0 0
  %388 = vmatpush1.bf16.msra.mxu0 0
  %389 = vmatprep.subr.bf16.mxu0 0
  %390 = vmatpush1.bf16.msra.mxu0 0
  %391 = vmatprep.subr.bf16.mxu0 0
  %392 = vmatpush1.bf16.msra.mxu0 0
  %393 = vmatprep.subr.bf16.mxu0 0
  %394 = vmatpush1.bf16.msra.mxu0 0
  %395 = vmatprep.subr.bf16.mxu0 0
  %396 = vmatpush1.bf16.msra.mxu0 0
  %397 = vmatprep.mubr.bf16.mxu0 0
  %398 = vmatmul.mubr.bf16.gmra.mrb[0].mxu0 %v281
  %v399 = vpop.f32.mrb[0].mxu0
  %v400 = vadd.f32 %v315, %v399
  %v401 = vpop.f32.mrb[0].mxu0
  %v402 = vpop.f32.mrb[0].mxu0
  %v403 = vadd.f32 %v315, %v402
  %v404 = vpop.f32.mrb[0].mxu0
  %405 = vmatprep.mubr.bf16.mxu0 0
  %406 = vmatmul.mubr.bf16.gmra.mrb[0].mxu0 %v282
  %v407 = vpop.f32.mrb[0].mxu0
  %v408 = vadd.f32 %v315, %v407
  %v409 = vpop.f32.mrb[0].mxu0
  %v410 = vpop.f32.mrb[0].mxu0
  %v411 = vadd.f32 %v315, %v410
  %v412 = vpop.f32.mrb[0].mxu0
  %413 = vmatprep.mubr.bf16.mxu0 0
  %414 = vmatmul.mubr.bf16.gmra.mrb[0].mxu0 %v283
  %v415 = vpop.f32.mrb[0].mxu0
  %v416 = vadd.f32 %v315, %v415
  %v417 = vpop.f32.mrb[0].mxu0
  %v418 = vpop.f32.mrb[0].mxu0
  %v419 = vadd.f32 %v315, %v418
  %v420 = vpop.f32.mrb[0].mxu0
  %421 = vmatprep.mubr.bf16.mxu0 0
  %422 = vmatmul.mubr.bf16.gmra.mrb[0].mxu0 %v284
  %v423 = vpop.f32.mrb[0].mxu0
  %v424 = vadd.f32 %v315, %v423
  %v425 = vpop.f32.mrb[0].mxu0
  %v426 = vpop.f32.mrb[0].mxu0
  %v427 = vadd.f32 %v315, %v426
  %v428 = vpop.f32.mrb[0].mxu0
  %429 = vmatprep.mubr.bf16.mxu0 0
  %430 = vmatmul.mubr.bf16.gmra.mrb[0].mxu0 %v285
  %v431 = vpop.f32.mrb[0].mxu0
  %v432 = vadd.f32 %v315, %v431
  %v433 = vpop.f32.mrb[0].mxu0
  %v434 = vpop.f32.mrb[0].mxu0
  %v435 = vadd.f32 %v315, %v434
  %v436 = vpop.f32.mrb[0].mxu0
  %437 = vmatprep.mubr.bf16.mxu0 0
  %438 = vmatmul.mubr.bf16.gmra.mrb[0].mxu0 %v286
  %v439 = vpop.f32.mrb[0].mxu0
  %v440 = vadd.f32 %v315, %v439
  %v441 = vpop.f32.mrb[0].mxu0
  %v442 = vpop.f32.mrb[0].mxu0
  %v443 = vadd.f32 %v315, %v442
  %v444 = vpop.f32.mrb[0].mxu0
  %445 = vmatprep.mubr.bf16.mxu0 0
  %446 = vmatmul.mubr.bf16.gmra.mrb[0].mxu0 %v287
  %v447 = vpop.f32.mrb[0].mxu0
  %v448 = vadd.f32 %v315, %v447
  %v449 = vpop.f32.mrb[0].mxu0
  %v450 = vpop.f32.mrb[0].mxu0
  %v451 = vadd.f32 %v315, %v450
  %v452 = vpop.f32.mrb[0].mxu0
  %453 = vmatprep.mubr.bf16.mxu0 0
  %454 = vmatmul.mubr.bf16.gmra.mrb[0].mxu0 %v288
  %v455 = vpop.f32.mrb[0].mxu0
  %v456 = vadd.f32 %v315, %v455
  %v457 = vpop.f32.mrb[0].mxu0
  %v458 = vpop.f32.mrb[0].mxu0
  %v459 = vadd.f32 %v315, %v458
  %v460 = vpop.f32.mrb[0].mxu0
  %461 = vmatprep.mubr.bf16.mxu0 0
  %462 = vmatmul.mubr.bf16.gmra.mrb[0].mxu0 %v289
  %v463 = vpop.f32.mrb[0].mxu0
  %v464 = vadd.f32 %v315, %v463
  %v465 = vpop.f32.mrb[0].mxu0
  %v466 = vpop.f32.mrb[0].mxu0
  %v467 = vadd.f32 %v315, %v466
  %v468 = vpop.f32.mrb[0].mxu0
  %469 = vmatprep.mubr.bf16.mxu0 0
  %470 = vmatmul.mubr.bf16.gmra.mrb[0].mxu0 %v290
  %v471 = vpop.f32.mrb[0].mxu0
  %v472 = vadd.f32 %v315, %v471
  %v473 = vpop.f32.mrb[0].mxu0
  %v474 = vpop.f32.mrb[0].mxu0
  %v475 = vadd.f32 %v315, %v474
  %v476 = vpop.f32.mrb[0].mxu0
  %477 = vmatprep.mubr.bf16.mxu0 0
  %478 = vmatmul.mubr.bf16.gmra.mrb[0].mxu0 %v291
  %v479 = vpop.f32.mrb[0].mxu0
  %v480 = vadd.f32 %v315, %v479
  %v481 = vpop.f32.mrb[0].mxu0
  %v482 = vpop.f32.mrb[0].mxu0
  %v483 = vadd.f32 %v315, %v482
  %v484 = vpop.f32.mrb[0].mxu0
  %485 = vmatprep.mubr.bf16.mxu0 0
  %486 = vmatmul.mubr.bf16.gmra.mrb[0].mxu0 %v292
  %v487 = vpop.f32.mrb[0].mxu0
  %v488 = vadd.f32 %v315, %v487
  %v489 = vpop.f32.mrb[0].mxu0
  %v490 = vpop.f32.mrb[0].mxu0
  %v491 = vadd.f32 %v315, %v490
  %v492 = vpop.f32.mrb[0].mxu0
  %493 = vmatprep.mubr.bf16.mxu0 0
  %494 = vmatmul.mubr.bf16.gmra.mrb[0].mxu0 %v293
  %v495 = vpop.f32.mrb[0].mxu0
  %v496 = vadd.f32 %v315, %v495
  %v497 = vpop.f32.mrb[0].mxu0
  %v498 = vpop.f32.mrb[0].mxu0
  %v499 = vpop.f32.mrb[0].mxu0
  %500 = vdwg.mxu0
  %v501 = vmax.f32 %v400, 0.0
  %v502 = vmax.f32 %v403, 0.0
  %v503 = vmax.f32 %v408, 0.0
  %v504 = vmax.f32 %v411, 0.0
  %v505 = vmax.f32 %v416, 0.0
  %v506 = vmax.f32 %v419, 0.0
  %v507 = vmax.f32 %v424, 0.0
  %v508 = vmax.f32 %v427, 0.0
  %v509 = vmax.f32 %v432, 0.0
  %v510 = vmax.f32 %v435, 0.0
  %v511 = vmax.f32 %v440, 0.0
  %v512 = vmax.f32 %v443, 0.0
  %v513 = vmax.f32 %v448, 0.0
  %v514 = vmax.f32 %v451, 0.0
  %v515 = vmax.f32 %v456, 0.0
  %v516 = vmax.f32 %v459, 0.0
  %v517 = vmax.f32 %v464, 0.0
  %v518 = vmax.f32 %v467, 0.0
  %v519 = vmax.f32 %v472, 0.0
  %v520 = vmax.f32 %v475, 0.0
  %v521 = vmax.f32 %v480, 0.0
  %v522 = vmax.f32 %v483, 0.0
  %v523 = vmax.f32 %v488, 0.0
  %v524 = vmax.f32 %v491, 0.0
  %v525 = vmax.f32 %v496, 0.0
  %v526 = vpack.c.bf16 %v502, %v501
  %v527 = vpack.c.bf16 %v504, %v503
  %v528 = vpack.c.bf16 %v506, %v505
  %v529 = vpack.c.bf16 %v508, %v507
  %v530 = vpack.c.bf16 %v510, %v509
  %v531 = vpack.c.bf16 %v512, %v511
  %v532 = vpack.c.bf16 %v514, %v513
  %v533 = vpack.c.bf16 %v516, %v515
  %v534 = vpack.c.bf16 %v518, %v517
  %v535 = vpack.c.bf16 %v520, %v519
  %v536 = vpack.c.bf16 %v522, %v521
  %v537 = vpack.c.bf16 %v524, %v523
  %v538 = vpack.c.bf16 %v525, %v525
  %v539 = vld [vmem:[%s5] sm:$0xf]
  %v540 = vld [vmem:[%s5 + $0x4] sm:$0xf]
  %v541 = vld [vmem:[%s5 + $0x8] sm:$0xf]
  %v542 = vld [vmem:[%s5 + $0xc] sm:$0xf]
  %v543 = vld [vmem:[%s5 + $0x10] sm:$0xf]
  %v544 = vld [vmem:[%s5 + $0x14] sm:$0xf]
  %v545 = vld [vmem:[%s5 + $0x18] sm:$0xf]
  %v546 = vld [vmem:[%s5 + $0x1c] sm:$0xf]
  %v547 = vld [vmem:[%s5 + $0x20] sm:$0xf]
  %v548 = vld [vmem:[%s5 + $0x24] sm:$0xf]
  %v549 = vld [vmem:[%s5 + $0x28] sm:$0xf]
  %v550 = vld [vmem:[%s5 + $0x2c] sm:$0xf]
  %v551 = vld [vmem:[%s5 + $0x30] sm:$0xf]
  %v552 = vld [vmem:[%s5 + $0x34] sm:$0xf]
  %v553 = vld [vmem:[%s5 + $0x38] sm:$0xf]
  %v554 = vld [vmem:[%s5 + $0x3c] sm:$0xf]
  %v555 = vld [vmem:[%s6] sm:$0x1]
  %v557 = vlaneseq
  %v558 = vshrl.u32 %v557, 7
  %v559 = vsub.s32 0, %v558
  %v560 = vrot.slane %v555, %v559
  %v578 = vunpack.c.l.b16 %v539
  %v579 = vunpack.c.l.b16 %v540
  %v580 = vunpack.c.l.b16 %v541
  %v581 = vunpack.c.l.b16 %v542
  %v582 = vunpack.c.l.b16 %v543
  %v583 = vunpack.c.l.b16 %v544
  %v584 = vunpack.c.l.b16 %v545
  %v585 = vunpack.c.l.b16 %v546
  %v586 = vunpack.c.l.b16 %v547
  %v587 = vunpack.c.l.b16 %v548
  %v588 = vunpack.c.l.b16 %v549
  %v589 = vunpack.c.l.b16 %v550
  %v590 = vunpack.c.l.b16 %v551
  %v591 = vunpack.c.l.b16 %v552
  %v592 = vunpack.c.l.b16 %v553
  %v593 = vunpack.c.l.b16 %v554
  %v594 = vpack.c.b16 %v579, %v578
  %v595 = vpack.c.b16 %v581, %v580
  %v596 = vpack.c.b16 %v583, %v582
  %v597 = vpack.c.b16 %v585, %v584
  %v598 = vpack.c.b16 %v587, %v586
  %v599 = vpack.c.b16 %v589, %v588
  %v600 = vpack.c.b16 %v591, %v590
  %v601 = vpack.c.b16 %v593, %v592
  %610 = vmatprep.subr.bf16.mxu0 0
  %611 = vmatpush1.bf16.msra.mxu0 %v594
  %612 = vmatprep.subr.bf16.mxu0 0
  %613 = vmatpush1.bf16.msra.mxu0 %v595
  %614 = vmatprep.subr.bf16.mxu0 0
  %615 = vmatpush1.bf16.msra.mxu0 %v596
  %616 = vmatprep.subr.bf16.mxu0 0
  %617 = vmatpush1.bf16.msra.mxu0 %v597
  %618 = vmatprep.subr.bf16.mxu0 0
  %619 = vmatpush1.bf16.msra.mxu0 %v598
  %620 = vmatprep.subr.bf16.mxu0 0
  %621 = vmatpush1.bf16.msra.mxu0 %v599
  %622 = vmatprep.subr.bf16.mxu0 0
  %623 = vmatpush1.bf16.msra.mxu0 %v600
  %624 = vmatprep.subr.bf16.mxu0 0
  %625 = vmatpush1.bf16.msra.mxu0 %v601
  %626 = vmatprep.subr.bf16.mxu0 0
  %627 = vmatpush1.bf16.msra.mxu0 0
  %628 = vmatprep.subr.bf16.mxu0 0
  %629 = vmatpush1.bf16.msra.mxu0 0
  %630 = vmatprep.subr.bf16.mxu0 0
  %631 = vmatpush1.bf16.msra.mxu0 0
  %632 = vmatprep.subr.bf16.mxu0 0
  %633 = vmatpush1.bf16.msra.mxu0 0
  %634 = vmatprep.subr.bf16.mxu0 0
  %635 = vmatpush1.bf16.msra.mxu0 0
  %636 = vmatprep.subr.bf16.mxu0 0
  %637 = vmatpush1.bf16.msra.mxu0 0
  %638 = vmatprep.subr.bf16.mxu0 0
  %639 = vmatpush1.bf16.msra.mxu0 0
  %640 = vmatprep.subr.bf16.mxu0 0
  %641 = vmatpush1.bf16.msra.mxu0 0
  %642 = vmatprep.mubr.bf16.mxu0 0
  %643 = vmatmul.mubr.bf16.gmra.mrb[0].mxu0 %v526
  %v644 = vpop.f32.mrb[0].mxu0
  %v645 = vadd.f32 %v560, %v644
  %v646 = vpop.f32.mrb[0].mxu0
  %v647 = vpop.f32.mrb[0].mxu0
  %v648 = vadd.f32 %v560, %v647
  %v649 = vpop.f32.mrb[0].mxu0
  %650 = vmatprep.mubr.bf16.mxu0 0
  %651 = vmatmul.mubr.bf16.gmra.mrb[0].mxu0 %v527
  %v652 = vpop.f32.mrb[0].mxu0
  %v653 = vadd.f32 %v560, %v652
  %v654 = vpop.f32.mrb[0].mxu0
  %v655 = vpop.f32.mrb[0].mxu0
  %v656 = vadd.f32 %v560, %v655
  %v657 = vpop.f32.mrb[0].mxu0
  %658 = vmatprep.mubr.bf16.mxu0 0
  %659 = vmatmul.mubr.bf16.gmra.mrb[0].mxu0 %v528
  %v660 = vpop.f32.mrb[0].mxu0
  %v661 = vadd.f32 %v560, %v660
  %v662 = vpop.f32.mrb[0].mxu0
  %v663 = vpop.f32.mrb[0].mxu0
  %v664 = vadd.f32 %v560, %v663
  %v665 = vpop.f32.mrb[0].mxu0
  %666 = vmatprep.mubr.bf16.mxu0 0
  %667 = vmatmul.mubr.bf16.gmra.mrb[0].mxu0 %v529
  %v668 = vpop.f32.mrb[0].mxu0
  %v669 = vadd.f32 %v560, %v668
  %v670 = vpop.f32.mrb[0].mxu0
  %v671 = vpop.f32.mrb[0].mxu0
  %v672 = vadd.f32 %v560, %v671
  %v673 = vpop.f32.mrb[0].mxu0
  %674 = vmatprep.mubr.bf16.mxu0 0
  %675 = vmatmul.mubr.bf16.gmra.mrb[0].mxu0 %v530
  %v676 = vpop.f32.mrb[0].mxu0
  %v677 = vadd.f32 %v560, %v676
  %v678 = vpop.f32.mrb[0].mxu0
  %v679 = vpop.f32.mrb[0].mxu0
  %v680 = vadd.f32 %v560, %v679
  %v681 = vpop.f32.mrb[0].mxu0
  %682 = vmatprep.mubr.bf16.mxu0 0
  %683 = vmatmul.mubr.bf16.gmra.mrb[0].mxu0 %v531
  %v684 = vpop.f32.mrb[0].mxu0
  %v685 = vadd.f32 %v560, %v684
  %v686 = vpop.f32.mrb[0].mxu0
  %v687 = vpop.f32.mrb[0].mxu0
  %v688 = vadd.f32 %v560, %v687
  %v689 = vpop.f32.mrb[0].mxu0
  %690 = vmatprep.mubr.bf16.mxu0 0
  %691 = vmatmul.mubr.bf16.gmra.mrb[0].mxu0 %v532
  %v692 = vpop.f32.mrb[0].mxu0
  %v693 = vadd.f32 %v560, %v692
  %v694 = vpop.f32.mrb[0].mxu0
  %v695 = vpop.f32.mrb[0].mxu0
  %v696 = vadd.f32 %v560, %v695
  %v697 = vpop.f32.mrb[0].mxu0
  %698 = vmatprep.mubr.bf16.mxu0 0
  %699 = vmatmul.mubr.bf16.gmra.mrb[0].mxu0 %v533
  %v700 = vpop.f32.mrb[0].mxu0
  %v701 = vadd.f32 %v560, %v700
  %v702 = vpop.f32.mrb[0].mxu0
  %v703 = vpop.f32.mrb[0].mxu0
  %v704 = vadd.f32 %v560, %v703
  %v705 = vpop.f32.mrb[0].mxu0
  %706 = vmatprep.mubr.bf16.mxu0 0
  %707 = vmatmul.mubr.bf16.gmra.mrb[0].mxu0 %v534
  %v708 = vpop.f32.mrb[0].mxu0
  %v709 = vadd.f32 %v560, %v708
  %v710 = vpop.f32.mrb[0].mxu0
  %v711 = vpop.f32.mrb[0].mxu0
  %v712 = vadd.f32 %v560, %v711
  %v713 = vpop.f32.mrb[0].mxu0
  %714 = vmatprep.mubr.bf16.mxu0 0
  %715 = vmatmul.mubr.bf16.gmra.mrb[0].mxu0 %v535
  %v716 = vpop.f32.mrb[0].mxu0
  %v717 = vadd.f32 %v560, %v716
  %v718 = vpop.f32.mrb[0].mxu0
  %v719 = vpop.f32.mrb[0].mxu0
  %v720 = vadd.f32 %v560, %v719
  %v721 = vpop.f32.mrb[0].mxu0
  %722 = vmatprep.mubr.bf16.mxu0 0
  %723 = vmatmul.mubr.bf16.gmra.mrb[0].mxu0 %v536
  %v724 = vpop.f32.mrb[0].mxu0
  %v725 = vadd.f32 %v560, %v724
  %v726 = vpop.f32.mrb[0].mxu0
  %v727 = vpop.f32.mrb[0].mxu0
  %v728 = vadd.f32 %v560, %v727
  %v729 = vpop.f32.mrb[0].mxu0
  %730 = vmatprep.mubr.bf16.mxu0 0
  %731 = vmatmul.mubr.bf16.gmra.mrb[0].mxu0 %v537
  %v732 = vpop.f32.mrb[0].mxu0
  %v733 = vadd.f32 %v560, %v732
  %v734 = vpop.f32.mrb[0].mxu0
  %v735 = vpop.f32.mrb[0].mxu0
  %v736 = vadd.f32 %v560, %v735
  %v737 = vpop.f32.mrb[0].mxu0
  %738 = vmatprep.mubr.bf16.mxu0 0
  %739 = vmatmul.mubr.bf16.gmra.mrb[0].mxu0 %v538
  %v740 = vpop.f32.mrb[0].mxu0
  %v741 = vadd.f32 %v560, %v740
  %v742 = vpop.f32.mrb[0].mxu0
  %v743 = vpop.f32.mrb[0].mxu0
  %v744 = vpop.f32.mrb[0].mxu0
  %745 = vdwg.mxu0
  %vm746 = vcmask 31744
  %747 = vst.msk [vmem:[%s7] sm:$0xff] %vm746, %v645
  %748 = vst.msk [vmem:[%s7 + $0x8] sm:$0xff] %vm746, %v648
  %749 = vst.msk [vmem:[%s7 + $0x10] sm:$0xff] %vm746, %v653
  %750 = vst.msk [vmem:[%s7 + $0x18] sm:$0xff] %vm746, %v656
  %751 = vst.msk [vmem:[%s7 + $0x20] sm:$0xff] %vm746, %v661
  %752 = vst.msk [vmem:[%s7 + $0x28] sm:$0xff] %vm746, %v664
  %753 = vst.msk [vmem:[%s7 + $0x30] sm:$0xff] %vm746, %v669
  %754 = vst.msk [vmem:[%s7 + $0x38] sm:$0xff] %vm746, %v672
  %755 = vst.msk [vmem:[%s7 + $0x40] sm:$0xff] %vm746, %v677
  %756 = vst.msk [vmem:[%s7 + $0x48] sm:$0xff] %vm746, %v680
  %757 = vst.msk [vmem:[%s7 + $0x50] sm:$0xff] %vm746, %v685
  %758 = vst.msk [vmem:[%s7 + $0x58] sm:$0xff] %vm746, %v688
  %759 = vst.msk [vmem:[%s7 + $0x60] sm:$0xff] %vm746, %v693
  %760 = vst.msk [vmem:[%s7 + $0x68] sm:$0xff] %vm746, %v696
  %761 = vst.msk [vmem:[%s7 + $0x70] sm:$0xff] %vm746, %v701
  %762 = vst.msk [vmem:[%s7 + $0x78] sm:$0xff] %vm746, %v704
  %763 = vst.msk [vmem:[%s7 + $0x80] sm:$0xff] %vm746, %v709
  %764 = vst.msk [vmem:[%s7 + $0x88] sm:$0xff] %vm746, %v712
  %765 = vst.msk [vmem:[%s7 + $0x90] sm:$0xff] %vm746, %v717
  %766 = vst.msk [vmem:[%s7 + $0x98] sm:$0xff] %vm746, %v720
  %767 = vst.msk [vmem:[%s7 + $0xa0] sm:$0xff] %vm746, %v725
  %768 = vst.msk [vmem:[%s7 + $0xa8] sm:$0xff] %vm746, %v728
  %769 = vst.msk [vmem:[%s7 + $0xb0] sm:$0xff] %vm746, %v733
  %770 = vst.msk [vmem:[%s7 + $0xb8] sm:$0xff] %vm746, %v736
  %771 = vst.msk [vmem:[%s7 + $0xc0] sm:$0xff] %vm746, %v741
  // Predicated region
  $region30: #{tpu_custom_call.1} parent=0 // pred_check
    _
  $region31: #{tpu_custom_call.1} parent=0 // pred_check_branch
    %773 = sbr.rel (0) target = $region33
  $region32: #{tpu_custom_call.1} parent=0 // pred_region
    _
  $region33: #{tpu_custom_call.1} parent=0 // pred_fallthru
    _
  // Predicated region
  $region34: #{tpu_custom_call.1} parent=0 // pred_check
    _
  $region35: #{tpu_custom_call.1} parent=0 // pred_check_branch
    %775 = sbr.rel (0) target = $region37
  $region36: #{tpu_custom_call.1} parent=0 // pred_region
    _
  $region37: #{tpu_custom_call.1} parent=0 // pred_fallthru
    _

</llo_original>
